<compile_context>
chip_gen: v7x
topology: tpu7x:2x2x1
jax: 0.10.0
libtpu: 0.0.40
codegen_flags: <defaults>
</compile_context>

<pallas_src>
import jax
import jax.numpy as jnp
from jax.experimental import pallas as pl
from jax.experimental.pallas import tpu as pltpu


# ---------------- Pallas kernels ----------------

def _conv_stats_kernel(w_ref, p_ref, o_ref, sum_ref, sq_ref):
    # (OC, K) @ (K, tile_m) -> (OC, tile_m) on the MXU; M is the lane axis.
    acc = jnp.dot(w_ref[...], p_ref[...], preferred_element_type=jnp.float32)
    o_ref[...] = acc
    # Per-tile per-channel partial BN statistics.  Zero-padded M columns give
    # exactly-zero conv outputs (no bias), so they contribute nothing to
    # sum / sumsq; the wrapper divides by the true M.
    s = jnp.sum(acc, axis=1, keepdims=True)            # (OC, 1)
    sq = jnp.sum(acc * acc, axis=1, keepdims=True)     # (OC, 1)
    # Replicate across 128 lanes so the stats blocks are (OC, 128)
    # (layout-legal, lane-dense); the wrapper divides the reduction by 128.
    sum_ref[...] = jnp.broadcast_to(s, sum_ref.shape)
    sq_ref[...] = jnp.broadcast_to(sq, sq_ref.shape)


def _bn_relu_kernel(x_ref, scale_ref, shift_ref, o_ref):
    # Fused affine BatchNorm (pre-folded scale/shift) + ReLU.
    # x_ref: (OC, T); scale/shift: (OC, 1); o_ref: (1, OC, T).
    y = x_ref[...] * scale_ref[...] + shift_ref[...]
    o_ref[0] = jnp.maximum(y, 0.0)


# ---------------- glue (plain JAX) ----------------

def _im2col_t(x, kh, kw, stride, padding, dilation):
    # NCHW -> transposed im2col patches (C*KH*KW, N*OH*OW).
    # K ordering is C-major, kernel-position minor, matching
    # weight.reshape(OC, C*KH*KW).
    N, C, H, W = x.shape
    xp = jnp.pad(x, ((0, 0), (0, 0), (padding, padding), (padding, padding)))
    OH = (H + 2 * padding - dilation * (kh - 1) - 1) // stride + 1
    OW = (W + 2 * padding - dilation * (kw - 1) - 1) // stride + 1
    cols = []
    for i in range(kh):
        for j in range(kw):
            ii, jj = i * dilation, j * dilation
            cols.append(xp[:, :, ii:ii + stride * OH:stride,
                               jj:jj + stride * OW:stride])
    p = jnp.stack(cols, axis=0)        # (KH*KW, N, C, OH, OW)
    p = p.transpose(2, 0, 1, 3, 4)     # (C, KH*KW, N, OH, OW)
    return p.reshape(C * kh * kw, N * OH * OW), OH, OW


def basic_conv2d(x, weight, gamma, beta, *, stride=1, padding=0, dilation=1,
                 max_pool=1, eps=1e-5, tile_m=512):
    N, C, H, W = x.shape
    OC, _, KH, KW = weight.shape

    # TODO(synk): fuse im2col into the conv kernel (K grid axis over KH*KW
    # positions reading shifted windows of a padded NHWC copy of x) to avoid
    # materializing the KH*KW-inflated patches matrix in HBM.
    patches_t, OH, OW = _im2col_t(x, KH, KW, stride, padding, dilation)
    K, M = patches_t.shape
    OHW = OH * OW

    # tile_m: as large as possible for HBM roofline, but keep the grid >= 2
    # so ("parallel",) can shard across 2 TensorCores (v7x), and keep
    # double-buffered tiles well under the 32 MiB scoped VMEM (v7x = 64 MiB).
    two_way = max(128, ((pl.cdiv(M, 2) + 127) // 128) * 128)
    tile_m = max(128, min(tile_m, two_way))
    while tile_m > 128 and 2 * (K * tile_m * 2 + OC * tile_m * 4) > 12 * 1024 * 1024:
        tile_m //= 2

    Mp = ((M + tile_m - 1) // tile_m) * tile_m
    if Mp != M:
        patches_t = jnp.pad(patches_t, ((0, 0), (0, Mp - M)))
    num_tiles = Mp // tile_m

    # bf16 MXU operands (f32 accumulation): halves HBM bytes of the dominant
    # (K, Mp) patches stream and gets native bf16 MXU throughput.
    p_bf16 = patches_t.astype(jnp.bfloat16)
    w2 = weight.reshape(OC, K).astype(jnp.bfloat16)          # (OC, K)

    vmem_limit = 32 * 1024 * 1024

    # ---- conv as lane-dense tiled matmul + fused BN partial stats ----
    conv_out, psum, psq = pl.pallas_call(
        _conv_stats_kernel,
        out_shape=(jax.ShapeDtypeStruct((OC, Mp), jnp.float32),
                   jax.ShapeDtypeStruct((OC, num_tiles * 128), jnp.float32),
                   jax.ShapeDtypeStruct((OC, num_tiles * 128), jnp.float32)),
        grid_spec=pltpu.PrefetchScalarGridSpec(
            num_scalar_prefetch=0,
            grid=(num_tiles,),
            in_specs=[pl.BlockSpec((OC, K), lambda i: (0, 0)),
                      pl.BlockSpec((K, tile_m), lambda i: (0, i))],
            out_specs=[pl.BlockSpec((OC, tile_m), lambda i: (0, i)),
                       pl.BlockSpec((OC, 128), lambda i: (0, i)),
                       pl.BlockSpec((OC, 128), lambda i: (0, i))],
        ),
        compiler_params=pltpu.CompilerParams(
            dimension_semantics=("parallel",),
            vmem_limit_bytes=vmem_limit),
    )(w2, p_bf16)

    # BatchNorm2d training-mode (biased) batch stats from the tiny partial
    # sums (each per-tile scalar was replicated across 128 lanes).
    total = jnp.sum(psum, axis=1) / 128.0                    # (OC,)
    total_sq = jnp.sum(psq, axis=1) / 128.0                  # (OC,)
    mean = total / M
    var = jnp.maximum(total_sq / M - mean * mean, 0.0)
    scale = gamma / jnp.sqrt(var + eps)
    shift = beta - mean * scale
    scale2 = scale.reshape(OC, 1).astype(jnp.float32)
    shift2 = shift.reshape(OC, 1).astype(jnp.float32)

    # ---- fused BN + ReLU ----
    if OHW % 128 == 0:
        # Fast path: write directly in (N, OC, OH*OW) layout -> the final
        # NCHW reshape is contiguous, no XLA transpose round-trip.
        y = pl.pallas_call(
            _bn_relu_kernel,
            out_shape=jax.ShapeDtypeStruct((N, OC, OHW), jnp.float32),
            grid_spec=pltpu.PrefetchScalarGridSpec(
                num_scalar_prefetch=0,
                grid=(N,),
                in_specs=[pl.BlockSpec((OC, OHW), lambda n: (0, n)),
                          pl.BlockSpec((OC, 1), lambda n: (0, 0)),
                          pl.BlockSpec((OC, 1), lambda n: (0, 0))],
                out_specs=pl.BlockSpec((1, OC, OHW), lambda n: (n, 0, 0)),
            ),
            compiler_params=pltpu.CompilerParams(
                dimension_semantics=("parallel",),
                vmem_limit_bytes=vmem_limit),
        )(conv_out, scale2, shift2)
        y = y.reshape(N, OC, OH, OW)
    else:
        # Fallback: keep the lane-dense (OC, Mp) layout, transpose in XLA.
        y = pl.pallas_call(
            _bn_relu_kernel,
            out_shape=jax.ShapeDtypeStruct((1, OC, Mp), jnp.float32),
            grid_spec=pltpu.PrefetchScalarGridSpec(
                num_scalar_prefetch=0,
                grid=(num_tiles,),
                in_specs=[pl.BlockSpec((OC, tile_m), lambda i: (0, i)),
                          pl.BlockSpec((OC, 1), lambda i: (0, 0)),
                          pl.BlockSpec((OC, 1), lambda i: (0, 0))],
                out_specs=pl.BlockSpec((1, OC, tile_m), lambda i: (0, 0, i)),
            ),
            compiler_params=pltpu.CompilerParams(
                dimension_semantics=("parallel",),
                vmem_limit_bytes=vmem_limit),
        )(conv_out, scale2, shift2)
        y = y[0, :, :M].reshape(OC, N, OH, OW).transpose(1, 0, 2, 3)

    # MaxPool2d(max_pool); default max_pool=1 is the identity.
    # TODO(synk): fuse max_pool>1 into the BN+ReLU kernel's output tiling.
    if max_pool > 1:
        y = jax.lax.reduce_window(
            y, -jnp.inf, jax.lax.max,
            window_dimensions=(1, 1, max_pool, max_pool),
            window_strides=(1, 1, max_pool, max_pool),
            padding="VALID")
    return y


# ---------------- pure-JAX reference ----------------

def reference(x, weight, gamma, beta, *, stride, padding, dilation,
              max_pool, eps=1e-5):
    conv = jax.lax.conv_general_dilated(
        x, weight, window_strides=(stride, stride),
        padding=[(padding, padding), (padding, padding)],
        rhs_dilation=(dilation, dilation),
        dimension_numbers=("NCHW", "OIHW", "NCHW"))
    mean = jnp.mean(conv, axis=(0, 2, 3), keepdims=True)
    var = jnp.mean((conv - mean) ** 2, axis=(0, 2, 3), keepdims=True)
    y = (conv - mean) / jnp.sqrt(var + eps)
    y = y * gamma.reshape(1, -1, 1, 1) + beta.reshape(1, -1, 1, 1)
    y = jnp.maximum(y, 0.0)
    if max_pool > 1:
        y = jax.lax.reduce_window(
            y, -jnp.inf, jax.lax.max,
            window_dimensions=(1, 1, max_pool, max_pool),
            window_strides=(1, 1, max_pool, max_pool),
            padding="VALID")
    return y


if __name__ == "__main__":
    # BasicConv2d(in_channel=4, out_channel=8, kernel_size=3, padding=1)
    N, Cin, H, W = 2, 4, 16, 16
    Cout, Ks = 8, 3
    stride, padding, dilation, max_pool = 1, 1, 1, 1

    key = jax.random.PRNGKey(0)
    k1, k2, k3, k4 = jax.random.split(key, 4)
    x = jax.random.normal(k1, (N, Cin, H, W), jnp.float32)
    weight = jax.random.normal(k2, (Cout, Cin, Ks, Ks), jnp.float32) * 0.1
    gamma = 1.0 + 0.1 * jax.random.normal(k3, (Cout,), jnp.float32)
    beta = 0.1 * jax.random.normal(k4, (Cout,), jnp.float32)

    out = basic_conv2d(x, weight, gamma, beta, stride=stride, padding=padding,
                       dilation=dilation, max_pool=max_pool)
    out = jax.block_until_ready(out)

    ref = reference(x, weight, gamma, beta, stride=stride, padding=padding,
                    dilation=dilation, max_pool=max_pool)
    assert out.shape == ref.shape, (out.shape, ref.shape)
    err = float(jnp.max(jnp.abs(out - ref)))
    assert err < 5e-2, f"max abs error too large: {err}"
    print("KERNEL_OK")
</pallas_src>

<mosaic_0001>
module attributes {stable_mosaic.version = 11 : i64} {
  func.func @_conv_stats_kernel(%arg0: i32, %arg1: memref<8x36xbf16, #tpu.memory_space<vmem>>, %arg2: memref<36x256xbf16, #tpu.memory_space<vmem>>, %arg3: memref<8x256xf32, #tpu.memory_space<vmem>>, %arg4: memref<8x128xf32, #tpu.memory_space<vmem>>, %arg5: memref<8x128xf32, #tpu.memory_space<vmem>>) attributes {dimension_semantics = [#tpu.dimension_semantics<parallel>], iteration_bounds = array<i64: 2>, scalar_prefetch = 0 : i64, scratch_operands = 0 : i64, tpu.core_type = #tpu.core_type<tc>, window_params = [{pipeline_mode = #tpu.pipeline_mode<synchronous>, transform_indices = @transform_0, window_bounds = array<i64: 8, 36>}, {transform_indices = @transform_1, window_bounds = array<i64: 36, 256>}, {transform_indices = @transform_2, window_bounds = array<i64: 8, 256>}, {transform_indices = @transform_3, window_bounds = array<i64: 8, 128>}, {transform_indices = @transform_4, window_bounds = array<i64: 8, 128>}]} {
    %c0 = arith.constant 0 : index
    %c0_0 = arith.constant 0 : index
    %0 = vector.load %arg1[%c0, %c0_0] : memref<8x36xbf16, #tpu.memory_space<vmem>>, vector<8x36xbf16>
    %c0_1 = arith.constant 0 : index
    %c0_2 = arith.constant 0 : index
    %1 = vector.load %arg2[%c0_1, %c0_2] : memref<36x256xbf16, #tpu.memory_space<vmem>>, vector<36x256xbf16>
    %cst = arith.constant dense<0.000000e+00> : vector<8x256xf32>
    %2 = tpu.matmul %0, %1, %cst {dimension_numbers = #tpu.dot_dimension_numbers<[1], [0], [0], [1], [0, 0, 1, 1], [], []>} : vector<8x36xbf16>, vector<36x256xbf16>, vector<8x256xf32> -> vector<8x256xf32>
    %c0_3 = arith.constant 0 : index
    %c0_4 = arith.constant 0 : index
    %3 = vector.load %arg3[%c0_3, %c0_4] : memref<8x256xf32, #tpu.memory_space<vmem>>, vector<8x256xf32>
    tpu.vector_store %arg3[%c0_3, %c0_4], %2 {strides = array<i32>} : memref<8x256xf32, #tpu.memory_space<vmem>>, vector<8x256xf32>,
    %cst_5 = arith.constant dense<0.000000e+00> : vector<8xf32>
    %4 = vector.multi_reduction <add>, %2, %cst_5 [1] : vector<8x256xf32> to vector<8xf32>
    %5 = vector.shape_cast %4 : vector<8xf32> to vector<8x1xf32>
    %6 = arith.mulf %2, %2 : vector<8x256xf32>
    %cst_6 = arith.constant dense<0.000000e+00> : vector<8xf32>
    %7 = vector.multi_reduction <add>, %6, %cst_6 [1] : vector<8x256xf32> to vector<8xf32>
    %8 = vector.shape_cast %7 : vector<8xf32> to vector<8x1xf32>
    %9 = vector.shape_cast %5 : vector<8x1xf32> to vector<8x1xf32>
    %10 = vector.broadcast %9 : vector<8x1xf32> to vector<8x128xf32>
    %c0_7 = arith.constant 0 : index
    %c0_8 = arith.constant 0 : index
    %11 = vector.load %arg4[%c0_7, %c0_8] : memref<8x128xf32, #tpu.memory_space<vmem>>, vector<8x128xf32>
    tpu.vector_store %arg4[%c0_7, %c0_8], %10 {strides = array<i32>} : memref<8x128xf32, #tpu.memory_space<vmem>>, vector<8x128xf32>,
    %12 = vector.shape_cast %8 : vector<8x1xf32> to vector<8x1xf32>
    %13 = vector.broadcast %12 : vector<8x1xf32> to vector<8x128xf32>
    %c0_9 = arith.constant 0 : index
    %c0_10 = arith.constant 0 : index
    %14 = vector.load %arg5[%c0_9, %c0_10] : memref<8x128xf32, #tpu.memory_space<vmem>>, vector<8x128xf32>
    tpu.vector_store %arg5[%c0_9, %c0_10], %13 {strides = array<i32>} : memref<8x128xf32, #tpu.memory_space<vmem>>, vector<8x128xf32>,
    return
  }
  func.func @transform_0(%arg0: i32) -> (i32, i32) {
    %c0_i32 = arith.constant 0 : i32
    %c0_i32_0 = arith.constant 0 : i32
    %c0_i32_1 = arith.constant 0 : i32
    return %c0_i32, %c0_i32_0 : i32, i32
  }
  func.func @transform_1(%arg0: i32) -> (i32, i32) {
    %c0_i32 = arith.constant 0 : i32
    %c0_i32_0 = arith.constant 0 : i32
    return %c0_i32, %arg0 : i32, i32
  }
  func.func @transform_2(%arg0: i32) -> (i32, i32) {
    %c0_i32 = arith.constant 0 : i32
    %c0_i32_0 = arith.constant 0 : i32
    return %c0_i32, %arg0 : i32, i32
  }
  func.func @transform_3(%arg0: i32) -> (i32, i32) {
    %c0_i32 = arith.constant 0 : i32
    %c0_i32_0 = arith.constant 0 : i32
    return %c0_i32, %arg0 : i32, i32
  }
  func.func @transform_4(%arg0: i32) -> (i32, i32) {
    %c0_i32 = arith.constant 0 : i32
    %c0_i32_0 = arith.constant 0 : i32
    return %c0_i32, %arg0 : i32, i32
  }
}

</mosaic_0001>

<llo_original>
// kernel: tpu_custom_call.1
$region0: #{tpu_custom_call.1}
  #allocation0 [shape = 'u32[]', space=smem, size = 0x4, offset = 0x4, fixed_abs, tag = 'smem constant byte address 0x4 - core index']
  #allocation1 [shape = 'u32[144,128]{1,0:T(1,128)}', space=vmem, size = 0x12000, scoped, tag = 'internal scratch']
  %s0 = inlined_call_operand.hbm [shape: bf16[8,36], index: 0, kind: input, shape index: {}]
  %s1 = inlined_call_operand.hbm [shape: bf16[36,512], index: 1, kind: input, shape index: {}]
  %s2 = inlined_call_operand.hbm [shape: f32[8,512], index: 2, kind: output, shape index: {0}]
  %s3 = inlined_call_operand.hbm [shape: f32[8,256], index: 3, kind: output, shape index: {1}]
  %s4 = inlined_call_operand.hbm [shape: f32[8,256], index: 4, kind: output, shape index: {2}]
  %5 = xla_tuple %s2, %s3, %s4
  %s6 = sld [smem:[#allocation0]]
  $region65: #{tpu_custom_call.1} parent=0
    _
  %s8 = ssub.s32 1, %s6
  %s9 = scalar_select 0, %s8, %s6
  $region1: #{tpu_custom_call.1} parent=0
    #allocation2 [shape = 'u8[2048]{0}', space=vmem, size = 0x800, scoped, tag = 'input window, operand 0, single buffered']
    #allocation3 [shape = 's32[2]{0}', space=sflag, size = 0x8, scoped, tag = 'scoped memory for tpu_custom_call.1']
    #allocation4 [shape = 's32[2]{0}', space=sflag, size = 0x8, scoped, tag = 'scoped memory for tpu_custom_call.1']
    #allocation5 [shape = 'u8[40960]{0}', space=vmem, size = 0xa000, scoped, tag = 'input window, operand 1']
    #allocation6 [shape = 's32[2]{0}', space=sflag, size = 0x8, scoped, tag = 'scoped memory for tpu_custom_call.1']
    #allocation7 [shape = 'u8[16384]{0}', space=vmem, size = 0x4000, scoped, tag = 'output window, operand 0']
    #allocation8 [shape = 'u8[8192]{0}', space=vmem, size = 0x2000, scoped, tag = 'output window, operand 1']
    #allocation9 [shape = 's32[2]{0}', space=sflag, size = 0x8, scoped, tag = 'scoped memory for tpu_custom_call.1']
    #allocation10 [shape = 'u8[8192]{0}', space=vmem, size = 0x2000, scoped, tag = 'output window, operand 2']
    %10 = vsyncpa [#allocation3], 0
    %11 = vsyncpa [#allocation6], 0
    %s12 = scalar_lea.sflag [#allocation6], 1
    %13 = vsyncpa %s12, 0
    %14 = vsyncpa [#allocation4], 0
    %s15 = scalar_lea.sflag [#allocation4], 1
    %16 = vsyncpa %s15, 0
    %17 = vsyncpa [#allocation9], 0
    %s18 = scalar_lea.sflag [#allocation9], 1
    %19 = vsyncpa %s18, 0
    loop: start=0, step=1, limit=4
    $region2: #{tpu_custom_call.1} parent=1 // loop_pre_header
      _
    $region3: #{tpu_custom_call.1} parent=1 // loop_header
      %s21 = sphi 0, %s25
      %p22 = scmp.ge.s32.totalorder %s21, 4
      %s29 = sphi 0, %s29
      %s31 = sphi 0, %s29
      %s32 = sphi 0, %s31
      %s46 = sphi 0, %s32
      %s52 = sphi 0, %s54
      %s55 = sphi 0, %s52
      %s56 = sphi 0, %s55
      %s72 = sphi 0, %s56
      %s78 = sphi 0, %s80
      %s81 = sphi 0, %s78
      %s82 = sphi 0, %s81
      %s98 = sphi 0, %s82
      %s104 = sphi 0, %s106
      %s107 = sphi 0, %s104
      %s108 = sphi 0, %s107
      %s124 = sphi 0, %s108
      %s130 = sphi 0, %s132
      %s133 = sphi 0, %s130
      %s134 = sphi 0, %s133
      %s150 = sphi 0, %s134
    $region4: #{tpu_custom_call.1} parent=1 // loop_header_branch
      %24 = sbr.rel (%p22) target = $region8
    $region5: #{tpu_custom_call.1} parent=1 // loop_body
      %s26 = ssub.s32 %s21, 1
      %s27 = ssub.s32 %s21, 2
      %s28 = sadd.s32 %s21, 1
      %s30 = sadd.s32 %s29, 1
      %p33 = scmp.eq.s32.totalorder %s21, 1
      %p34 = scmp.ne.s32.totalorder %s29, %s31
      %p35 = scmp.eq.s32.totalorder %s21, 0
      %p36 = por %p34, %p35
      %p37 = scmp.ne.s32.totalorder %s29, %s31
      %p38 = scmp.eq.s32.totalorder %s26, 1
      %p39 = por %p37, %p38
      %p40 = scmp.ne.s32.totalorder %s31, %s32
      %p41 = scmp.eq.s32.totalorder %s26, 0
      %p42 = por %p40, %p41
      %p43 = scmp.ne.s32.totalorder %s31, %s32
      %p44 = scmp.eq.s32.totalorder %s27, 1
      %p45 = por %p43, %p44
      %p47 = scmp.ne.s32.totalorder %s32, %s46
      %p48 = scmp.eq.s32.totalorder %s27, 0
      %p49 = por %p47, %p48
      %s50 = ssub.s32 %s21, %s28
      %p51 = scmp.eq.s32.totalorder %s50, 0
      %s53 = sadd.s32 %s52, 1
      %s54 = scalar_select %p51, %s52, %s53
      %p57 = pneg %p51
      %p58 = scmp.eq.s32.totalorder %s21, 1
      %p59 = por %p57, %p58
      %p60 = scmp.ne.s32.totalorder %s52, %s55
      %p61 = scmp.eq.s32.totalorder %s21, 0
      %p62 = por %p60, %p61
      %p63 = scmp.ne.s32.totalorder %s52, %s55
      %p64 = scmp.eq.s32.totalorder %s26, 1
      %p65 = por %p63, %p64
      %p66 = scmp.ne.s32.totalorder %s55, %s56
      %p67 = scmp.eq.s32.totalorder %s26, 0
      %p68 = por %p66, %p67
      %p69 = scmp.ne.s32.totalorder %s55, %s56
      %p70 = scmp.eq.s32.totalorder %s27, 1
      %p71 = por %p69, %p70
      %p73 = scmp.ne.s32.totalorder %s56, %s72
      %p74 = scmp.eq.s32.totalorder %s27, 0
      %p75 = por %p73, %p74
      %s76 = ssub.s32 %s21, %s28
      %p77 = scmp.eq.s32.totalorder %s76, 0
      %s79 = sadd.s32 %s78, 1
      %s80 = scalar_select %p77, %s78, %s79
      %p83 = pneg %p77
      %p84 = scmp.eq.s32.totalorder %s21, 1
      %p85 = por %p83, %p84
      %p86 = scmp.ne.s32.totalorder %s78, %s81
      %p87 = scmp.eq.s32.totalorder %s21, 0
      %p88 = por %p86, %p87
      %p89 = scmp.ne.s32.totalorder %s78, %s81
      %p90 = scmp.eq.s32.totalorder %s26, 1
      %p91 = por %p89, %p90
      %p92 = scmp.ne.s32.totalorder %s81, %s82
      %p93 = scmp.eq.s32.totalorder %s26, 0
      %p94 = por %p92, %p93
      %p95 = scmp.ne.s32.totalorder %s81, %s82
      %p96 = scmp.eq.s32.totalorder %s27, 1
      %p97 = por %p95, %p96
      %p99 = scmp.ne.s32.totalorder %s82, %s98
      %p100 = scmp.eq.s32.totalorder %s27, 0
      %p101 = por %p99, %p100
      %s102 = ssub.s32 %s21, %s28
      %p103 = scmp.eq.s32.totalorder %s102, 0
      %s105 = sadd.s32 %s104, 1
      %s106 = scalar_select %p103, %s104, %s105
      %p109 = pneg %p103
      %p110 = scmp.eq.s32.totalorder %s21, 1
      %p111 = por %p109, %p110
      %p112 = scmp.ne.s32.totalorder %s104, %s107
      %p113 = scmp.eq.s32.totalorder %s21, 0
      %p114 = por %p112, %p113
      %p115 = scmp.ne.s32.totalorder %s104, %s107
      %p116 = scmp.eq.s32.totalorder %s26, 1
      %p117 = por %p115, %p116
      %p118 = scmp.ne.s32.totalorder %s107, %s108
      %p119 = scmp.eq.s32.totalorder %s26, 0
      %p120 = por %p118, %p119
      %p121 = scmp.ne.s32.totalorder %s107, %s108
      %p122 = scmp.eq.s32.totalorder %s27, 1
      %p123 = por %p121, %p122
      %p125 = scmp.ne.s32.totalorder %s108, %s124
      %p126 = scmp.eq.s32.totalorder %s27, 0
      %p127 = por %p125, %p126
      %s128 = ssub.s32 %s21, %s28
      %p129 = scmp.eq.s32.totalorder %s128, 0
      %s131 = sadd.s32 %s130, 1
      %s132 = scalar_select %p129, %s130, %s131
      %p135 = pneg %p129
      %p136 = scmp.eq.s32.totalorder %s21, 1
      %p137 = por %p135, %p136
      %p138 = scmp.ne.s32.totalorder %s130, %s133
      %p139 = scmp.eq.s32.totalorder %s21, 0
      %p140 = por %p138, %p139
      %p141 = scmp.ne.s32.totalorder %s130, %s133
      %p142 = scmp.eq.s32.totalorder %s26, 1
      %p143 = por %p141, %p142
      %p144 = scmp.ne.s32.totalorder %s133, %s134
      %p145 = scmp.eq.s32.totalorder %s26, 0
      %p146 = por %p144, %p145
      %p147 = scmp.ne.s32.totalorder %s133, %s134
      %p148 = scmp.eq.s32.totalorder %s27, 1
      %p149 = por %p147, %p148
      %p151 = scmp.ne.s32.totalorder %s134, %s150
      %p152 = scmp.eq.s32.totalorder %s27, 0
      %p153 = por %p151, %p152
      %p154 = scmp.le.s32.totalorder 1, %s21
      %p155 = scmp.lt.s32.totalorder %s21, 3
      %p156 = pnand %p154, %p155
      %p157 = pneg %p156
      // Predicated region
      $region9: #{tpu_custom_call.1} parent=5 // pred_check
        _
      $region10: #{tpu_custom_call.1} parent=5 // pred_check_branch
        %159 = sbr.rel (%p156) target = $region12
      $region11: #{tpu_custom_call.1} parent=5 // pred_region
        %s160 = ssub.s32 %s21, 1
        // Predicated region
        $region13: #{tpu_custom_call.1} parent=11 // pred_check
          %p161 = pneg %p42
        $region14: #{tpu_custom_call.1} parent=11 // pred_check_branch
          %163 = sbr.rel (%p161) target = $region16
        $region15: #{tpu_custom_call.1} parent=11 // pred_region
          %s165 = ssub.s32 64, 64
          %166 = vsyncadd [#allocation3], %s165
          %s168 = sshll.u32 [#allocation2], 4
          %s169 = int_to_ptr.vmem [resolvable:$true] %s168
          %171 = dma.hbm_to_vmem [thread:$0]  %s0, 64, %s169, [#allocation3]
        $region16: #{tpu_custom_call.1} parent=11 // pred_fallthru
          _
      $region12: #{tpu_custom_call.1} parent=5 // pred_fallthru
        _
      %p172 = scmp.lt.s32.totalorder %s21, 2
      // Predicated region
      $region17: #{tpu_custom_call.1} parent=5 // pred_check
        %p173 = pneg %p172
      $region18: #{tpu_custom_call.1} parent=5 // pred_check_branch
        %175 = sbr.rel (%p173) target = $region20
      $region19: #{tpu_custom_call.1} parent=5 // pred_region
        // Predicated region
        $region21: #{tpu_custom_call.1} parent=19 // pred_check
          %p176 = pneg %p62
        $region22: #{tpu_custom_call.1} parent=19 // pred_check_branch
          %178 = sbr.rel (%p176) target = $region24
        $region23: #{tpu_custom_call.1} parent=19 // pred_region
          %s179 = sand.u32 %s52, 1
          %s180 = scalar_lea.sflag [#allocation6], %s179
          %s181 = sand.u32 %s52, 1
          %s182 = smul.addr %s181, 40
          %s183 = scalar_lea.vmem [#allocation5], %s182
          %s184 = smul.u32 2, %s21
          %s186 = ssub.s32 640, 640
          %187 = vsyncadd %s180, %s186
          %s188 = smul.addr %s184, 64
          %s189 = scalar_lea.hbm %s1, %s188
          %s190 = sshll.u32 %s183, 4
          %s191 = int_to_ptr.vmem [resolvable:$true] %s190
          %196 = dma.hbm_to_vmem [thread:$0]  %s189, 640, %s191, %s180, 256, 128, 8
        $region24: #{tpu_custom_call.1} parent=19 // pred_fallthru
          _
      $region20: #{tpu_custom_call.1} parent=5 // pred_fallthru
        _
      %p197 = scmp.le.s32.totalorder 1, %s21
      %p198 = scmp.lt.s32.totalorder %s21, 3
      %p199 = pnand %p197, %p198
      %p200 = pneg %p199
      // Predicated region
      $region25: #{tpu_custom_call.1} parent=5 // pred_check
        _
      $region26: #{tpu_custom_call.1} parent=5 // pred_check_branch
        %202 = sbr.rel (%p199) target = $region28
      $region27: #{tpu_custom_call.1} parent=5 // pred_region
        %s203 = ssub.s32 %s21, 1
        // Predicated region
        $region29: #{tpu_custom_call.1} parent=27 // pred_check
          %p204 = pneg %p42
        $region30: #{tpu_custom_call.1} parent=27 // pred_check_branch
          %206 = sbr.rel (%p204) target = $region32
        $region31: #{tpu_custom_call.1} parent=27 // pred_region
          %207 = dma.done [#allocation3], 64
        $region32: #{tpu_custom_call.1} parent=27 // pred_fallthru
          _
        %s208 = sand.u32 %s55, 1
        %s209 = scalar_lea.sflag [#allocation6], %s208
        %s210 = sand.u32 %s55, 1
        %s211 = smul.addr %s210, 40
        %s212 = scalar_lea.vmem [#allocation5], %s211
        // Predicated region
        $region33: #{tpu_custom_call.1} parent=27 // pred_check
          %p213 = pneg %p68
        $region34: #{tpu_custom_call.1} parent=27 // pred_check_branch
          %215 = sbr.rel (%p213) target = $region36
        $region35: #{tpu_custom_call.1} parent=27 // pred_region
          %216 = dma.done %s209, 640
        $region36: #{tpu_custom_call.1} parent=27 // pred_fallthru
          _
        %p217 = pneg %p42
        %p218 = pneg %p39
        %s219 = sand.u32 %s55, 1
        %s220 = scalar_lea.sflag [#allocation6], %s219
        %s221 = sand.u32 %s55, 1
        %s222 = smul.addr %s221, 40
        %s223 = scalar_lea.vmem [#allocation5], %s222
        %p224 = pneg %p68
        %p225 = pneg %p65
        %p226 = pneg %p94
        %p227 = pneg %p91
        %s228 = sand.u32 %s81, 1
        %s229 = scalar_lea.sflag [#allocation4], %s228
        %s230 = sand.u32 %s81, 1
        %s231 = smul.addr %s230, 16
        %s232 = scalar_lea.vmem [#allocation7], %s231
        %p233 = pneg %p120
        %p234 = pneg %p117
        %s235 = sand.u32 %s26, 1
        %s236 = scalar_lea.sflag [#allocation9], %s235
        %s237 = sand.u32 %s107, 1
        %s238 = smul.addr %s237, 8
        %s239 = scalar_lea.vmem [#allocation8], %s238
        %p240 = pneg %p146
        %p241 = pneg %p143
        %s242 = sand.u32 %s26, 1
        %s243 = scalar_lea.sflag [#allocation9], %s242
        %s244 = sand.u32 %s133, 1
        %s245 = smul.addr %s244, 8
        %s246 = scalar_lea.vmem [#allocation10], %s245
        %s247 = smul.u32 2, %s26
        %s248 = smul.u32 2, %s26
        %v250 = vld [vmem:[#allocation2] sm:$0xf]
        %v251 = vld [vmem:[%s212] sm:$0xff]
        %v252 = vld [vmem:[%s212 + $0x8] sm:$0xff]
        %v253 = vld [vmem:[%s212 + $0x10] sm:$0xff]
        %v254 = vld [vmem:[%s212 + $0x18] sm:$0xff]
        %v255 = vld [vmem:[%s212 + $0x20] sm:$0x33]
        %v261 = vunpack.c.l.b16 %v251
        %v262 = vunpack.c.h.b16 %v251
        %v263 = vunpack.c.l.b16 %v252
        %v264 = vunpack.c.h.b16 %v252
        %v265 = vunpack.c.l.b16 %v253
        %v266 = vunpack.c.h.b16 %v253
        %v267 = vunpack.c.l.b16 %v254
        %v268 = vunpack.c.h.b16 %v254
        %v269 = vunpack.c.l.b16 %v255
        %v270 = vunpack.c.h.b16 %v255
        %v271 = vpack.c.b16 %v263, %v261
        %v272 = vpack.c.b16 %v264, %v262
        %v273 = vpack.c.b16 %v267, %v265
        %v274 = vpack.c.b16 %v268, %v266
        %v275 = vpack.c.b16 %v269, %v269
        %v276 = vpack.c.b16 %v270, %v270
        %vm281 = vcmask 293888
        %v283 = vsel %vm281, %v250, 0
        %vm285 = vcmask 1041408
        %v287 = vsel %vm285, %v275, 0
        %v290 = vsel %vm285, %v276, 0
        %292 = vmatprep.subr.bf16.mxu0 %v272
        %293 = vmatpush1.bf16.msra.mxu0 %v271
        %294 = vmatprep.subr.bf16.mxu0 %v274
        %295 = vmatpush1.bf16.msra.mxu0 %v273
        %296 = vmatprep.subr.bf16.mxu0 %v290
        %297 = vmatpush1.bf16.msra.mxu0 %v287
        %298 = vmatprep.subr.bf16.mxu0 0
        %299 = vmatpush1.bf16.msra.mxu0 0
        %300 = vmatprep.subr.bf16.mxu0 0
        %301 = vmatpush1.bf16.msra.mxu0 0
        %302 = vmatprep.subr.bf16.mxu0 0
        %303 = vmatpush1.bf16.msra.mxu0 0
        %304 = vmatprep.subr.bf16.mxu0 0
        %305 = vmatpush1.bf16.msra.mxu0 0
        %306 = vmatprep.subr.bf16.mxu0 0
        %307 = vmatpush1.bf16.msra.mxu0 0
        %308 = vmatprep.subr.bf16.mxu0 0
        %309 = vmatpush1.bf16.msra.mxu0 0
        %310 = vmatprep.subr.bf16.mxu0 0
        %311 = vmatpush1.bf16.msra.mxu0 0
        %312 = vmatprep.subr.bf16.mxu0 0
        %313 = vmatpush1.bf16.msra.mxu0 0
        %314 = vmatprep.subr.bf16.mxu0 0
        %315 = vmatpush1.bf16.msra.mxu0 0
        %316 = vmatprep.subr.bf16.mxu0 0
        %317 = vmatpush1.bf16.msra.mxu0 0
        %318 = vmatprep.subr.bf16.mxu0 0
        %319 = vmatpush1.bf16.msra.mxu0 0
        %320 = vmatprep.subr.bf16.mxu0 0
        %321 = vmatpush1.bf16.msra.mxu0 0
        %322 = vmatprep.subr.bf16.mxu0 0
        %323 = vmatpush1.bf16.msra.mxu0 0
        %324 = vmatprep.mubr.bf16.mxu0 0
        %325 = vmatmul.mubr.bf16.gmra.mrb[0].mxu0 %v283
        %v326 = vpop.f32.mrb[0].mxu0
        %v327 = vadd.f32 0.0, %v326
        %v328 = vpop.f32.mrb[0].mxu0
        %v329 = vadd.f32 0.0, %v328
        %v330 = vpop.f32.mrb[0].mxu0
        %v331 = vpop.f32.mrb[0].mxu0
        %332 = vdwg.mxu0
        %333 = vst [vmem:[%s232] sm:$0xff] %v327
        %334 = vst [vmem:[%s232 + $0x8] sm:$0xff] %v329
        %v335 = vadd.f32 %v327, %v329
        %336 = vadd.xlane.f32.xlu0 %v335
        %v337 = vpop.xlane.xlu0 %336
        %v338 = vmul.f32 %v327, %v327
        %v339 = vmul.f32 %v329, %v329
        %v340 = vadd.f32 %v338, %v339
        %341 = vadd.xlane.f32.xlu0 %v340
        %v342 = vpop.xlane.xlu0 %341
        %343 = vst [vmem:[%s239] sm:$0xff] %v337
        %344 = vst [vmem:[%s246] sm:$0xff] %v342
        %s345 = sand.u32 %s81, 1
        %s346 = scalar_lea.sflag [#allocation4], %s345
        %s347 = sand.u32 %s81, 1
        %s348 = smul.addr %s347, 16
        %s349 = scalar_lea.vmem [#allocation7], %s348
        %s350 = sand.u32 %s26, 1
        %s351 = scalar_lea.sflag [#allocation9], %s350
        %s352 = sand.u32 %s107, 1
        %s353 = smul.addr %s352, 8
        %s354 = scalar_lea.vmem [#allocation8], %s353
        %s355 = sand.u32 %s26, 1
        %s356 = scalar_lea.sflag [#allocation9], %s355
        %s357 = sand.u32 %s133, 1
        %s358 = smul.addr %s357, 8
        %s359 = scalar_lea.vmem [#allocation10], %s358
        // Predicated region
        $region37: #{tpu_custom_call.1} parent=27 // pred_check
          %p360 = pneg %p91
        $region38: #{tpu_custom_call.1} parent=27 // pred_check_branch
          %362 = sbr.rel (%p360) target = $region40
        $region39: #{tpu_custom_call.1} parent=27 // pred_region
          %s363 = smul.u32 2, %s26
          %s365 = ssub.s32 256, 256
          %366 = vsyncadd %s346, %s365
          %s367 = smul.addr %s363, 128
          %s368 = scalar_lea.hbm %s2, %s367
          %s370 = sshll.u32 %s349, 4
          %s371 = int_to_ptr.vmem [resolvable:$true] %s370
          %373 = dma.vmem_to_hbm [thread:$0]  %s371, 256, %s368, %s346
        $region40: #{tpu_custom_call.1} parent=27 // pred_fallthru
          _
        // Predicated region
        $region41: #{tpu_custom_call.1} parent=27 // pred_check
          %p374 = pneg %p117
        $region42: #{tpu_custom_call.1} parent=27 // pred_check_branch
          %376 = sbr.rel (%p374) target = $region44
        $region43: #{tpu_custom_call.1} parent=27 // pred_region
          %s378 = ssub.s32 128, 128
          %379 = vsyncadd %s351, %s378
          %s380 = smul.addr %s26, 128
          %s381 = scalar_lea.hbm %s3, %s380
          %s383 = sshll.u32 %s354, 4
          %s384 = int_to_ptr.vmem [resolvable:$true] %s383
          %386 = dma.vmem_to_hbm [thread:$0]  %s384, 128, %s381, %s351
        $region44: #{tpu_custom_call.1} parent=27 // pred_fallthru
          _
        // Predicated region
        $region45: #{tpu_custom_call.1} parent=27 // pred_check
          %p387 = pneg %p143
        $region46: #{tpu_custom_call.1} parent=27 // pred_check_branch
          %389 = sbr.rel (%p387) target = $region48
        $region47: #{tpu_custom_call.1} parent=27 // pred_region
          %s391 = ssub.s32 128, 128
          %392 = vsyncadd %s356, %s391
          %s393 = smul.addr %s26, 128
          %s394 = scalar_lea.hbm %s4, %s393
          %s396 = sshll.u32 %s359, 4
          %s397 = int_to_ptr.vmem [resolvable:$true] %s396
          %399 = dma.vmem_to_hbm [thread:$0]  %s397, 128, %s394, %s356
        $region48: #{tpu_custom_call.1} parent=27 // pred_fallthru
          _
      $region28: #{tpu_custom_call.1} parent=5 // pred_fallthru
        _
      %p400 = scmp.le.s32.totalorder 2, %s21
      // Predicated region
      $region49: #{tpu_custom_call.1} parent=5 // pred_check
        %p401 = pneg %p400
      $region50: #{tpu_custom_call.1} parent=5 // pred_check_branch
        %403 = sbr.rel (%p401) target = $region52
      $region51: #{tpu_custom_call.1} parent=5 // pred_region
        %s404 = ssub.s32 %s21, 2
        // Predicated region
        $region53: #{tpu_custom_call.1} parent=51 // pred_check
          %p405 = pneg %p97
        $region54: #{tpu_custom_call.1} parent=51 // pred_check_branch
          %407 = sbr.rel (%p405) target = $region56
        $region55: #{tpu_custom_call.1} parent=51 // pred_region
          %s408 = sand.u32 %s82, 1
          %s409 = scalar_lea.sflag [#allocation4], %s408
          %s410 = sand.u32 %s82, 1
          %s411 = smul.addr %s410, 16
          %s412 = scalar_lea.vmem [#allocation7], %s411
          %413 = dma.done %s409, 256
        $region56: #{tpu_custom_call.1} parent=51 // pred_fallthru
          _
        // Predicated region
        $region57: #{tpu_custom_call.1} parent=51 // pred_check
          %p414 = pneg %p123
        $region58: #{tpu_custom_call.1} parent=51 // pred_check_branch
          %416 = sbr.rel (%p414) target = $region60
        $region59: #{tpu_custom_call.1} parent=51 // pred_region
          %s417 = sand.u32 %s27, 1
          %s418 = scalar_lea.sflag [#allocation9], %s417
          %s419 = sand.u32 %s108, 1
          %s420 = smul.addr %s419, 8
          %s421 = scalar_lea.vmem [#allocation8], %s420
          %422 = dma.done %s418, 128
        $region60: #{tpu_custom_call.1} parent=51 // pred_fallthru
          _
        // Predicated region
        $region61: #{tpu_custom_call.1} parent=51 // pred_check
          %p423 = pneg %p149
        $region62: #{tpu_custom_call.1} parent=51 // pred_check_branch
          %425 = sbr.rel (%p423) target = $region64
        $region63: #{tpu_custom_call.1} parent=51 // pred_region
          %s426 = sand.u32 %s27, 1
          %s427 = scalar_lea.sflag [#allocation9], %s426
          %s428 = sand.u32 %s134, 1
          %s429 = smul.addr %s428, 8
          %s430 = scalar_lea.vmem [#allocation10], %s429
          %431 = dma.done %s427, 128
        $region64: #{tpu_custom_call.1} parent=51 // pred_fallthru
          _
      $region52: #{tpu_custom_call.1} parent=5 // pred_fallthru
        _
    $region6: #{tpu_custom_call.1} parent=1 // loop_footer
      %s25 = sadd.s32 1, %s21
    $region7: #{tpu_custom_call.1} parent=1 // loop_footer_branch
      %20 = sbr.rel target = $region3
    $region8: #{tpu_custom_call.1} parent=1 // loop_exit
      _
    %432 = vsyncpa [#allocation3], 1
    %s433 = scalar_lea.sflag [#allocation3], 1
    %434 = vsyncpa %s433, 1
    %435 = vsyncpa [#allocation6], 1
    %s436 = scalar_lea.sflag [#allocation6], 1
    %437 = vsyncpa %s436, 1
    %438 = vsyncpa [#allocation4], 1
    %s439 = scalar_lea.sflag [#allocation4], 1
    %440 = vsyncpa %s439, 1
    %441 = vsyncpa [#allocation9], 1
    %s442 = scalar_lea.sflag [#allocation9], 1
    %443 = vsyncpa %s442, 1

</llo_original>
